<compile_context>
chip_gen: v7x
topology: tpu7x:2x2x1
jax: 0.10.0
libtpu: 0.0.40
codegen_flags: <defaults>
</compile_context>

<pallas_src>
import functools

import jax
import jax.numpy as jnp
from jax.experimental import pallas as pl
from jax.experimental.pallas import tpu as pltpu


# ---------------------------------------------------------------------------
# Chip / budget helpers
# ---------------------------------------------------------------------------
def _chip_vmem_bytes():
    try:
        return int(pltpu.get_tpu_info().vmem_capacity_bytes)
    except Exception:
        return 64 << 20  # conservative (v7x per-TC VMEM)


def _pick_d_tile(d, c, budget_bytes, itemsize=4, override=None):
    """Largest lane-aligned D tile whose double-buffered (C, td) block fits the
    budget.  Prefers an exact divisor of D (no tail masking needed)."""
    if override is not None:
        return max(1, min(override, d))
    max_td = max(128, (budget_bytes // (2 * itemsize * c)) // 128 * 128)
    if d <= max_td:
        return d
    cand = max_td
    while cand >= 128:
        if d % cand == 0:
            return cand
        cand -= 128
    return max_td  # cdiv grid + in-kernel tail masking


def _pick_exchange_tile(d, c, budget_bytes, itemsize=4, override=None):
    """D tile for the exchange kernel: ~5 live (C, td) buffers + the (C, C) one-hot."""
    if override is not None:
        return max(1, min(override, d))
    per_col = 5 * c * itemsize
    avail = max(budget_bytes - 8 * c * c, 0)
    max_td = max(128, (avail // per_col) // 128 * 128)
    if d <= max_td:
        return d
    cand = max_td
    while cand >= 128:
        if d % cand == 0:
            return cand
        cand -= 128
    return max_td


# ---------------------------------------------------------------------------
# Fused single-kernel path (small problems): mean -> MLP -> rank -> exchange
# ---------------------------------------------------------------------------
def _fused_kernel(x_ref, w1_ref, b1_ref, w2_ref, b2_ref, o_ref, *, inv_d, descending):
    x = x_ref[0]                                               # (C, D) f32
    c = x.shape[0]

    # AdaptiveAvgPool1d(1): per-channel mean (lane reduce).
    m_row = jnp.sum(x_ref[...], axis=-1) * inv_d               # (1, C)

    # Tiny MLP: Linear -> LeakyReLU(0.01) -> Linear -> Sigmoid.
    h = jnp.dot(m_row, w1_ref[...], preferred_element_type=jnp.float32) + b1_ref[...]
    h = jnp.where(h > 0, h, 0.01 * h)
    s_row = jax.nn.sigmoid(
        jnp.dot(h, w2_ref[...], preferred_element_type=jnp.float32) + b2_ref[...])  # (1, C)

    # In-kernel argsort via rank counting (stable; descending when requested).
    ii = jax.lax.broadcasted_iota(jnp.int32, (c, c), 0)        # row index
    jj = jax.lax.broadcasted_iota(jnp.int32, (c, c), 1)        # col index
    eye = (ii == jj).astype(jnp.float32)
    s_col = jnp.sum(eye * s_row, axis=1, keepdims=True)        # (C, 1) exact copy of s
    if descending:
        first = (s_col > s_row).astype(jnp.int32)              # i strictly before j
    else:
        first = (s_col < s_row).astype(jnp.int32)
    ties = (s_col == s_row).astype(jnp.int32) * (ii < jj).astype(jnp.int32)
    rank = jnp.sum(first + ties, axis=0, keepdims=True)        # (1, C) sorted position of j

    # Channel exchange: one-hot permutation matmul on the MXU + residual add.
    perm = (rank == ii).astype(x.dtype)                        # perm[k, j] = (rank[j] == k)
    gathered = jnp.dot(perm, x, preferred_element_type=jnp.float32)
    o_ref[0] = x + gathered.astype(x.dtype)


# ---------------------------------------------------------------------------
# Two-pass path, kernel 1: tiled per-channel mean over D
# ---------------------------------------------------------------------------
def _mean_kernel(x_ref, m_ref, acc_ref, *, inv_d, d_total, td, mask_tail):
    dj = pl.program_id(1)

    @pl.when(dj == 0)
    def _init():
        acc_ref[...] = jnp.zeros_like(acc_ref)

    xv = x_ref[0]                                              # (C, td)
    if mask_tail:
        col = dj * td + jax.lax.broadcasted_iota(jnp.int32, xv.shape, 1)
        xv = jnp.where(col < d_total, xv, 0.0)
    acc_ref[...] += jnp.sum(xv, axis=-1, keepdims=True)        # (C, 1)

    @pl.when(dj == pl.num_programs(1) - 1)
    def _finalize():
        m_ref[0] = acc_ref[...] * inv_d


# ---------------------------------------------------------------------------
# Two-pass path, kernel 2: channel exchange from the resident (C, td) tile
# ---------------------------------------------------------------------------
def _exchange_kernel(ord_ref, x_ref, o_ref):
    x = x_ref[0]                                               # (C, td)
    ordc = ord_ref[0]                                          # (C, 1) int32
    c = x.shape[0]
    jj = jax.lax.broadcasted_iota(jnp.int32, (c, c), 1)
    perm = (ordc == jj).astype(x.dtype)                        # perm[k, j] = (order[k] == j)
    gathered = jnp.dot(perm, x, preferred_element_type=jnp.float32)
    o_ref[0] = x + gathered.astype(x.dtype)


# ---------------------------------------------------------------------------
# Wrapper
# ---------------------------------------------------------------------------
def cssa_forward(x, w1, b1, w2, b2, *, sort_small_first=False,
                 force_two_pass=False, max_d_tile=None):
    """x: (B, C, D) f32; w1: (C, H); b1: (H,); w2: (H, C); b2: (C,)."""
    B, C, D = x.shape
    H = w1.shape[1]
    itemsize = jnp.dtype(x.dtype).itemsize

    cap = _chip_vmem_bytes()
    vmem_limit = min(cap * 3 // 4, 128 << 20)                  # 96 MiB v5e/v6e, 48 MiB v7x

    # ---- Fused single-kernel path when the (C, D) slab comfortably fits VMEM ----
    fused_bytes = 6 * C * D * itemsize + 16 * C * C
    if (not force_two_pass) and fused_bytes <= cap // 3:
        return pl.pallas_call(
            functools.partial(_fused_kernel, inv_d=1.0 / D,
                              descending=not sort_small_first),
            out_shape=jax.ShapeDtypeStruct((B, C, D), x.dtype),
            grid=(B,),
            in_specs=[
                pl.BlockSpec((1, C, D), lambda b: (b, 0, 0)),
                pl.BlockSpec((C, H), lambda b: (0, 0)),
                pl.BlockSpec((1, H), lambda b: (0, 0)),
                pl.BlockSpec((H, C), lambda b: (0, 0)),
                pl.BlockSpec((1, C), lambda b: (0, 0)),
            ],
            out_specs=pl.BlockSpec((1, C, D), lambda b: (b, 0, 0)),
            compiler_params=pltpu.CompilerParams(
                dimension_semantics=("parallel",),
                vmem_limit_bytes=vmem_limit),
        )(x, w1, b1.reshape(1, H), w2, b2.reshape(1, C))

    # ---- Kernel 1: tiled per-channel means, grid = (B "parallel", D "arbitrary") ----
    td1 = _pick_d_tile(D, C, cap // 6, itemsize, override=max_d_tile)
    nd1 = pl.cdiv(D, td1)
    means = pl.pallas_call(
        functools.partial(_mean_kernel, inv_d=1.0 / D, d_total=D, td=td1,
                          mask_tail=(nd1 * td1 != D)),
        out_shape=jax.ShapeDtypeStruct((B, C, 1), jnp.float32),
        grid=(B, nd1),
        in_specs=[pl.BlockSpec((1, C, td1), lambda b, dj: (b, 0, dj))],
        out_specs=pl.BlockSpec((1, C, 1), lambda b, dj: (b, 0, 0)),
        scratch_shapes=[pltpu.VMEM((C, 1), jnp.float32)],
        compiler_params=pltpu.CompilerParams(
            dimension_semantics=("parallel", "arbitrary"),
            vmem_limit_bytes=vmem_limit),
    )(x)[..., 0]                                               # (B, C)

    # ---- JAX glue: tiny MLP + sigmoid + argsort (negligible work; keeps the
    #      kernels free of resident weights).  TODO(synk): torch.argsort done
    #      with jnp.argsort outside the kernel (no clean Pallas sort on TPU). ----
    h = means @ w1 + b1
    h = jnp.where(h > 0, h, 0.01 * h)
    scores = jax.nn.sigmoid(h @ w2 + b2)
    order = jnp.argsort(scores if sort_small_first else -scores, axis=-1)
    order = order.astype(jnp.int32).reshape(B, C, 1)

    # ---- Kernel 2: channel exchange + residual add, grid = (B, D-tiles), both parallel ----
    td2 = _pick_exchange_tile(D, C, cap // 3, itemsize, override=max_d_tile)
    nd2 = pl.cdiv(D, td2)
    out = pl.pallas_call(
        _exchange_kernel,
        out_shape=jax.ShapeDtypeStruct((B, C, D), x.dtype),
        grid=(B, nd2),
        in_specs=[
            pl.BlockSpec((1, C, 1), lambda b, dj: (b, 0, 0)),      # per-batch order
            pl.BlockSpec((1, C, td2), lambda b, dj: (b, 0, dj)),   # x tile (read once)
        ],
        out_specs=pl.BlockSpec((1, C, td2), lambda b, dj: (b, 0, dj)),
        compiler_params=pltpu.CompilerParams(
            dimension_semantics=("parallel", "parallel"),
            vmem_limit_bytes=vmem_limit),
    )(order, x)
    return out


# ---------------------------------------------------------------------------
# Pure-JAX reference
# ---------------------------------------------------------------------------
def _reference(x, w1, b1, w2, b2, *, sort_small_first=False):
    m = jnp.mean(x, axis=-1)
    h = m @ w1 + b1
    h = jnp.where(h > 0, h, 0.01 * h)
    s = jax.nn.sigmoid(h @ w2 + b2)
    order = jnp.argsort(s if sort_small_first else -s, axis=-1)
    gathered = jnp.take_along_axis(x, order[:, :, None], axis=1)
    return x + gathered


if __name__ == "__main__":
    B, C, D = 2, 32, 64
    ratio = 0.25
    H = int(C * ratio)                                         # 8

    key = jax.random.PRNGKey(0)
    kx, k1, k2, k3, k4, kx2 = jax.random.split(key, 6)

    x = jax.random.normal(kx, (B, C, D), dtype=jnp.float32)
    # PyTorch-like uniform init U(-1/sqrt(fan_in), 1/sqrt(fan_in)).
    lim1 = 1.0 / (C ** 0.5)
    lim2 = 1.0 / (H ** 0.5)
    w1 = jax.random.uniform(k1, (C, H), jnp.float32, -lim1, lim1)   # Linear(C -> H) weight.T
    b1 = jax.random.uniform(k2, (H,), jnp.float32, -lim1, lim1)
    w2 = jax.random.uniform(k3, (H, C), jnp.float32, -lim2, lim2)   # Linear(H -> C) weight.T
    b2 = jax.random.uniform(k4, (C,), jnp.float32, -lim2, lim2)

    # Path 1: fused single kernel (small-problem fast path).
    out = jax.block_until_ready(cssa_forward(x, w1, b1, w2, b2, sort_small_first=False))
    ref = _reference(x, w1, b1, w2, b2, sort_small_first=False)
    assert out.shape == (B, C, D)
    assert jnp.allclose(out, ref, atol=1e-5, rtol=1e-5), "fused path mismatch vs reference"

    # Path 2: two-pass path (forced, small D-tile so the multi-tile + tail-mask
    # machinery used for large shapes is exercised).
    D2 = 320
    x2 = jax.random.normal(kx2, (B, C, D2), dtype=jnp.float32)
    out2 = jax.block_until_ready(
        cssa_forward(x2, w1, b1, w2, b2, sort_small_first=False,
                     force_two_pass=True, max_d_tile=128))
    ref2 = _reference(x2, w1, b1, w2, b2, sort_small_first=False)
    assert out2.shape == (B, C, D2)
    assert jnp.allclose(out2, ref2, atol=1e-5, rtol=1e-5), "two-pass path mismatch vs reference"

    print("KERNEL_OK")
</pallas_src>

<mosaic_0001>
module attributes {stable_mosaic.version = 11 : i64} {
  func.func @_fused_kernel(%arg0: i32, %arg1: memref<1x32x64xf32, #tpu.memory_space<vmem>>, %arg2: memref<32x8xf32, #tpu.memory_space<vmem>>, %arg3: memref<1x8xf32, #tpu.memory_space<vmem>>, %arg4: memref<8x32xf32, #tpu.memory_space<vmem>>, %arg5: memref<1x32xf32, #tpu.memory_space<vmem>>, %arg6: memref<1x32x64xf32, #tpu.memory_space<vmem>>) attributes {dimension_semantics = [#tpu.dimension_semantics<parallel>], iteration_bounds = array<i64: 2>, scalar_prefetch = 0 : i64, scratch_operands = 0 : i64, tpu.core_type = #tpu.core_type<tc>, window_params = [{transform_indices = @transform_0, window_bounds = array<i64: 1, 32, 64>}, {pipeline_mode = #tpu.pipeline_mode<synchronous>, transform_indices = @transform_1, window_bounds = array<i64: 32, 8>}, {pipeline_mode = #tpu.pipeline_mode<synchronous>, transform_indices = @transform_2, window_bounds = array<i64: 1, 8>}, {pipeline_mode = #tpu.pipeline_mode<synchronous>, transform_indices = @transform_3, window_bounds = array<i64: 8, 32>}, {pipeline_mode = #tpu.pipeline_mode<synchronous>, transform_indices = @transform_4, window_bounds = array<i64: 1, 32>}, {transform_indices = @transform_5, window_bounds = array<i64: 1, 32, 64>}]} {
    %c0 = arith.constant 0 : index
    %c0_0 = arith.constant 0 : index
    %c0_1 = arith.constant 0 : index
    %0 = vector.load %arg1[%c0, %c0_0, %c0_1] : memref<1x32x64xf32, #tpu.memory_space<vmem>>, vector<1x32x64xf32>
    %1 = vector.shape_cast %0 : vector<1x32x64xf32> to vector<32x64xf32>
    %c0_2 = arith.constant 0 : index
    %c0_3 = arith.constant 0 : index
    %c0_4 = arith.constant 0 : index
    %2 = vector.load %arg1[%c0_2, %c0_3, %c0_4] : memref<1x32x64xf32, #tpu.memory_space<vmem>>, vector<1x32x64xf32>
    %cst = arith.constant dense<0.000000e+00> : vector<1x32xf32>
    %3 = vector.multi_reduction <add>, %2, %cst [2] : vector<1x32x64xf32> to vector<1x32xf32>
    %cst_5 = arith.constant 1.562500e-02 : f32
    %4 = vector.broadcast %cst_5 : f32 to vector<1x32xf32>
    %5 = arith.mulf %3, %4 : vector<1x32xf32>
    %c0_6 = arith.constant 0 : index
    %c0_7 = arith.constant 0 : index
    %6 = vector.load %arg2[%c0_6, %c0_7] : memref<32x8xf32, #tpu.memory_space<vmem>>, vector<32x8xf32>
    %cst_8 = arith.constant dense<0.000000e+00> : vector<1x8xf32>
    %7 = tpu.matmul %5, %6, %cst_8 {dimension_numbers = #tpu.dot_dimension_numbers<[1], [0], [0], [1], [0, 0, 1, 1], [], []>} : vector<1x32xf32>, vector<32x8xf32>, vector<1x8xf32> -> vector<1x8xf32>
    %c0_9 = arith.constant 0 : index
    %c0_10 = arith.constant 0 : index
    %8 = vector.load %arg3[%c0_9, %c0_10] : memref<1x8xf32, #tpu.memory_space<vmem>>, vector<1x8xf32>
    %9 = arith.addf %7, %8 : vector<1x8xf32>
    %cst_11 = arith.constant 0.000000e+00 : f32
    %10 = vector.broadcast %cst_11 : f32 to vector<1x8xf32>
    %11 = arith.cmpf ogt, %9, %10 : vector<1x8xf32>
    %cst_12 = arith.constant 0.00999999977 : f32
    %12 = vector.broadcast %cst_12 : f32 to vector<1x8xf32>
    %13 = arith.mulf %12, %9 : vector<1x8xf32>
    %14 = arith.select %11, %9, %13 : vector<1x8xi1>, vector<1x8xf32>
    %c0_13 = arith.constant 0 : index
    %c0_14 = arith.constant 0 : index
    %15 = vector.load %arg4[%c0_13, %c0_14] : memref<8x32xf32, #tpu.memory_space<vmem>>, vector<8x32xf32>
    %cst_15 = arith.constant dense<0.000000e+00> : vector<1x32xf32>
    %16 = tpu.matmul %14, %15, %cst_15 {dimension_numbers = #tpu.dot_dimension_numbers<[1], [0], [0], [1], [0, 0, 1, 1], [], []>} : vector<1x8xf32>, vector<8x32xf32>, vector<1x32xf32> -> vector<1x32xf32>
    %c0_16 = arith.constant 0 : index
    %c0_17 = arith.constant 0 : index
    %17 = vector.load %arg5[%c0_16, %c0_17] : memref<1x32xf32, #tpu.memory_space<vmem>>, vector<1x32xf32>
    %18 = arith.addf %16, %17 : vector<1x32xf32>
    %19 = arith.negf %18 : vector<1x32xf32>
    %20 = math.exp %19 : vector<1x32xf32>
    %cst_18 = arith.constant 1.000000e+00 : f32
    %21 = vector.broadcast %cst_18 : f32 to vector<1x32xf32>
    %22 = arith.addf %21, %20 : vector<1x32xf32>
    %23 = arith.divf %21, %22 : vector<1x32xf32>
    %24 = tpu.iota {dimensions = array<i32: 0>} : vector<32x32xi32>
    %25 = tpu.iota {dimensions = array<i32: 1>} : vector<32x32xi32>
    %26 = arith.cmpi eq, %24, %25 : vector<32x32xi32>
    %27 = arith.extui %26 : vector<32x32xi1> to vector<32x32xi32>
    %28 = arith.sitofp %27 : vector<32x32xi32> to vector<32x32xf32>
    %29 = vector.broadcast %23 : vector<1x32xf32> to vector<32x32xf32>
    %30 = arith.mulf %28, %29 : vector<32x32xf32>
    %cst_19 = arith.constant dense<0.000000e+00> : vector<32xf32>
    %31 = vector.multi_reduction <add>, %30, %cst_19 [1] : vector<32x32xf32> to vector<32xf32>
    %32 = vector.shape_cast %31 : vector<32xf32> to vector<32x1xf32>
    %33 = vector.broadcast %32 : vector<32x1xf32> to vector<32x32xf32>
    %34 = vector.broadcast %23 : vector<1x32xf32> to vector<32x32xf32>
    %35 = arith.cmpf ogt, %33, %34 : vector<32x32xf32>
    %36 = arith.extui %35 : vector<32x32xi1> to vector<32x32xi32>
    %37 = vector.broadcast %32 : vector<32x1xf32> to vector<32x32xf32>
    %38 = vector.broadcast %23 : vector<1x32xf32> to vector<32x32xf32>
    %39 = arith.cmpf oeq, %37, %38 : vector<32x32xf32>
    %40 = arith.extui %39 : vector<32x32xi1> to vector<32x32xi32>
    %41 = arith.cmpi slt, %24, %25 : vector<32x32xi32>
    %42 = arith.extui %41 : vector<32x32xi1> to vector<32x32xi32>
    %43 = arith.muli %40, %42 : vector<32x32xi32>
    %44 = arith.addi %36, %43 : vector<32x32xi32>
    %cst_20 = arith.constant dense<0> : vector<32xi32>
    %45 = vector.multi_reduction <add>, %44, %cst_20 [0] : vector<32x32xi32> to vector<32xi32>
    %46 = vector.shape_cast %45 : vector<32xi32> to vector<1x32xi32>
    %47 = vector.broadcast %46 : vector<1x32xi32> to vector<32x32xi32>
    %48 = arith.cmpi eq, %47, %24 : vector<32x32xi32>
    %49 = arith.extui %48 : vector<32x32xi1> to vector<32x32xi32>
    %50 = arith.sitofp %49 : vector<32x32xi32> to vector<32x32xf32>
    %cst_21 = arith.constant dense<0.000000e+00> : vector<32x64xf32>
    %51 = tpu.matmul %50, %1, %cst_21 {dimension_numbers = #tpu.dot_dimension_numbers<[1], [0], [0], [1], [0, 0, 1, 1], [], []>} : vector<32x32xf32>, vector<32x64xf32>, vector<32x64xf32> -> vector<32x64xf32>
    %52 = arith.addf %1, %51 : vector<32x64xf32>
    %c0_22 = arith.constant 0 : index
    %c0_23 = arith.constant 0 : index
    %c0_24 = arith.constant 0 : index
    %53 = vector.load %arg6[%c0_22, %c0_23, %c0_24] : memref<1x32x64xf32, #tpu.memory_space<vmem>>, vector<1x32x64xf32>
    %54 = vector.shape_cast %53 : vector<1x32x64xf32> to vector<32x64xf32>
    %55 = vector.shape_cast %52 : vector<32x64xf32> to vector<1x32x64xf32>
    tpu.vector_store %arg6[%c0_22, %c0_23, %c0_24], %55 {strides = array<i32>} : memref<1x32x64xf32, #tpu.memory_space<vmem>>, vector<1x32x64xf32>,
    return
  }
  func.func @transform_0(%arg0: i32) -> (i32, i32, i32) {
    %c0_i32 = arith.constant 0 : i32
    %c0_i32_0 = arith.constant 0 : i32
    %c0_i32_1 = arith.constant 0 : i32
    return %arg0, %c0_i32, %c0_i32_0 : i32, i32, i32
  }
  func.func @transform_1(%arg0: i32) -> (i32, i32) {
    %c0_i32 = arith.constant 0 : i32
    %c0_i32_0 = arith.constant 0 : i32
    %c0_i32_1 = arith.constant 0 : i32
    return %c0_i32, %c0_i32_0 : i32, i32
  }
  func.func @transform_2(%arg0: i32) -> (i32, i32) {
    %c0_i32 = arith.constant 0 : i32
    %c0_i32_0 = arith.constant 0 : i32
    %c0_i32_1 = arith.constant 0 : i32
    return %c0_i32, %c0_i32_0 : i32, i32
  }
  func.func @transform_3(%arg0: i32) -> (i32, i32) {
    %c0_i32 = arith.constant 0 : i32
    %c0_i32_0 = arith.constant 0 : i32
    %c0_i32_1 = arith.constant 0 : i32
    return %c0_i32, %c0_i32_0 : i32, i32
  }
  func.func @transform_4(%arg0: i32) -> (i32, i32) {
    %c0_i32 = arith.constant 0 : i32
    %c0_i32_0 = arith.constant 0 : i32
    %c0_i32_1 = arith.constant 0 : i32
    return %c0_i32, %c0_i32_0 : i32, i32
  }
  func.func @transform_5(%arg0: i32) -> (i32, i32, i32) {
    %c0_i32 = arith.constant 0 : i32
    %c0_i32_0 = arith.constant 0 : i32
    %c0_i32_1 = arith.constant 0 : i32
    return %arg0, %c0_i32, %c0_i32_0 : i32, i32, i32
  }
}

</mosaic_0001>

<llo_original>
// kernel: tpu_custom_call.1
$region0: #{tpu_custom_call.1}
  #allocation0 [shape = 'u32[]', space=smem, size = 0x4, offset = 0x4, fixed_abs, tag = 'smem constant byte address 0x4 - core index']
  #allocation1 [shape = 'u32[144,128]{1,0:T(1,128)}', space=vmem, size = 0x12000, scoped, tag = 'internal scratch']
  %s0 = inlined_call_operand.hbm [shape: f32[2,32,64], index: 0, kind: input, shape index: {}]
  %s1 = inlined_call_operand.vmem [shape: f32[32,8], index: 1, kind: input, shape index: {}]
  %s2 = inlined_call_operand.vmem [shape: f32[1,8], index: 2, kind: input, shape index: {}]
  %s3 = inlined_call_operand.vmem [shape: f32[8,32], index: 3, kind: input, shape index: {}]
  %s4 = inlined_call_operand.vmem [shape: f32[1,32], index: 4, kind: input, shape index: {}]
  %s5 = inlined_call_operand.hbm [shape: f32[2,32,64], index: 5, kind: output, shape index: {}]
  %s6 = sld [smem:[#allocation0]]
  $region57: #{tpu_custom_call.1} parent=0
    _
  %s8 = ssub.s32 1, %s6
  %s9 = scalar_select 0, %s8, %s6
  $region1: #{tpu_custom_call.1} parent=0
    #allocation2 [shape = 'u8[32768]{0}', space=vmem, size = 0x8000, scoped, tag = 'input window, operand 0']
    #allocation3 [shape = 's32[2]{0}', space=sflag, size = 0x8, scoped, tag = 'scoped memory for tpu_custom_call.1']
    #allocation4 [shape = 's32[2]{0}', space=sflag, size = 0x8, scoped, tag = 'scoped memory for tpu_custom_call.1']
    #allocation5 [shape = 'u8[32768]{0}', space=vmem, size = 0x8000, scoped, tag = 'output window, operand 0']
    %10 = vsyncpa [#allocation3], 0
    %s11 = scalar_lea.sflag [#allocation3], 1
    %12 = vsyncpa %s11, 0
    %13 = vsyncpa [#allocation4], 0
    %s14 = scalar_lea.sflag [#allocation4], 1
    %15 = vsyncpa %s14, 0
    loop: start=0, step=1, limit=4
    $region2: #{tpu_custom_call.1} parent=1 // loop_pre_header
      _
    $region3: #{tpu_custom_call.1} parent=1 // loop_header
      %s17 = sphi 0, %s21
      %p18 = scmp.ge.s32.totalorder %s17, 4
      %s27 = sphi 0, %s29
      %s30 = sphi 0, %s27
      %s31 = sphi 0, %s30
      %s47 = sphi 0, %s31
      %s51 = sphi 0, %s51
      %s53 = sphi 0, %s51
      %s54 = sphi 0, %s53
      %s68 = sphi 0, %s54
      %s72 = sphi 0, %s72
      %s74 = sphi 0, %s72
      %s75 = sphi 0, %s74
      %s89 = sphi 0, %s75
      %s93 = sphi 0, %s93
      %s95 = sphi 0, %s93
      %s96 = sphi 0, %s95
      %s110 = sphi 0, %s96
      %s114 = sphi 0, %s114
      %s116 = sphi 0, %s114
      %s117 = sphi 0, %s116
      %s131 = sphi 0, %s117
      %s137 = sphi 0, %s139
      %s140 = sphi 0, %s137
      %s141 = sphi 0, %s140
      %s157 = sphi 0, %s141
    $region4: #{tpu_custom_call.1} parent=1 // loop_header_branch
      %20 = sbr.rel (%p18) target = $region8
    $region5: #{tpu_custom_call.1} parent=1 // loop_body
      %s22 = ssub.s32 %s17, 1
      %s23 = ssub.s32 %s17, 2
      %s24 = sadd.s32 %s17, 1
      %s25 = ssub.s32 %s17, %s24
      %p26 = scmp.eq.s32.totalorder %s25, 0
      %s28 = sadd.s32 %s27, 1
      %s29 = scalar_select %p26, %s27, %s28
      %p32 = pneg %p26
      %p33 = scmp.eq.s32.totalorder %s17, 1
      %p34 = por %p32, %p33
      %p35 = scmp.ne.s32.totalorder %s27, %s30
      %p36 = scmp.eq.s32.totalorder %s17, 0
      %p37 = por %p35, %p36
      %p38 = scmp.ne.s32.totalorder %s27, %s30
      %p39 = scmp.eq.s32.totalorder %s22, 1
      %p40 = por %p38, %p39
      %p41 = scmp.ne.s32.totalorder %s30, %s31
      %p42 = scmp.eq.s32.totalorder %s22, 0
      %p43 = por %p41, %p42
      %p44 = scmp.ne.s32.totalorder %s30, %s31
      %p45 = scmp.eq.s32.totalorder %s23, 1
      %p46 = por %p44, %p45
      %p48 = scmp.ne.s32.totalorder %s31, %s47
      %p49 = scmp.eq.s32.totalorder %s23, 0
      %p50 = por %p48, %p49
      %s52 = sadd.s32 %s51, 1
      %p55 = scmp.eq.s32.totalorder %s17, 1
      %p56 = scmp.ne.s32.totalorder %s51, %s53
      %p57 = scmp.eq.s32.totalorder %s17, 0
      %p58 = por %p56, %p57
      %p59 = scmp.ne.s32.totalorder %s51, %s53
      %p60 = scmp.eq.s32.totalorder %s22, 1
      %p61 = por %p59, %p60
      %p62 = scmp.ne.s32.totalorder %s53, %s54
      %p63 = scmp.eq.s32.totalorder %s22, 0
      %p64 = por %p62, %p63
      %p65 = scmp.ne.s32.totalorder %s53, %s54
      %p66 = scmp.eq.s32.totalorder %s23, 1
      %p67 = por %p65, %p66
      %p69 = scmp.ne.s32.totalorder %s54, %s68
      %p70 = scmp.eq.s32.totalorder %s23, 0
      %p71 = por %p69, %p70
      %s73 = sadd.s32 %s72, 1
      %p76 = scmp.eq.s32.totalorder %s17, 1
      %p77 = scmp.ne.s32.totalorder %s72, %s74
      %p78 = scmp.eq.s32.totalorder %s17, 0
      %p79 = por %p77, %p78
      %p80 = scmp.ne.s32.totalorder %s72, %s74
      %p81 = scmp.eq.s32.totalorder %s22, 1
      %p82 = por %p80, %p81
      %p83 = scmp.ne.s32.totalorder %s74, %s75
      %p84 = scmp.eq.s32.totalorder %s22, 0
      %p85 = por %p83, %p84
      %p86 = scmp.ne.s32.totalorder %s74, %s75
      %p87 = scmp.eq.s32.totalorder %s23, 1
      %p88 = por %p86, %p87
      %p90 = scmp.ne.s32.totalorder %s75, %s89
      %p91 = scmp.eq.s32.totalorder %s23, 0
      %p92 = por %p90, %p91
      %s94 = sadd.s32 %s93, 1
      %p97 = scmp.eq.s32.totalorder %s17, 1
      %p98 = scmp.ne.s32.totalorder %s93, %s95
      %p99 = scmp.eq.s32.totalorder %s17, 0
      %p100 = por %p98, %p99
      %p101 = scmp.ne.s32.totalorder %s93, %s95
      %p102 = scmp.eq.s32.totalorder %s22, 1
      %p103 = por %p101, %p102
      %p104 = scmp.ne.s32.totalorder %s95, %s96
      %p105 = scmp.eq.s32.totalorder %s22, 0
      %p106 = por %p104, %p105
      %p107 = scmp.ne.s32.totalorder %s95, %s96
      %p108 = scmp.eq.s32.totalorder %s23, 1
      %p109 = por %p107, %p108
      %p111 = scmp.ne.s32.totalorder %s96, %s110
      %p112 = scmp.eq.s32.totalorder %s23, 0
      %p113 = por %p111, %p112
      %s115 = sadd.s32 %s114, 1
      %p118 = scmp.eq.s32.totalorder %s17, 1
      %p119 = scmp.ne.s32.totalorder %s114, %s116
      %p120 = scmp.eq.s32.totalorder %s17, 0
      %p121 = por %p119, %p120
      %p122 = scmp.ne.s32.totalorder %s114, %s116
      %p123 = scmp.eq.s32.totalorder %s22, 1
      %p124 = por %p122, %p123
      %p125 = scmp.ne.s32.totalorder %s116, %s117
      %p126 = scmp.eq.s32.totalorder %s22, 0
      %p127 = por %p125, %p126
      %p128 = scmp.ne.s32.totalorder %s116, %s117
      %p129 = scmp.eq.s32.totalorder %s23, 1
      %p130 = por %p128, %p129
      %p132 = scmp.ne.s32.totalorder %s117, %s131
      %p133 = scmp.eq.s32.totalorder %s23, 0
      %p134 = por %p132, %p133
      %s135 = ssub.s32 %s17, %s24
      %p136 = scmp.eq.s32.totalorder %s135, 0
      %s138 = sadd.s32 %s137, 1
      %s139 = scalar_select %p136, %s137, %s138
      %p142 = pneg %p136
      %p143 = scmp.eq.s32.totalorder %s17, 1
      %p144 = por %p142, %p143
      %p145 = scmp.ne.s32.totalorder %s137, %s140
      %p146 = scmp.eq.s32.totalorder %s17, 0
      %p147 = por %p145, %p146
      %p148 = scmp.ne.s32.totalorder %s137, %s140
      %p149 = scmp.eq.s32.totalorder %s22, 1
      %p150 = por %p148, %p149
      %p151 = scmp.ne.s32.totalorder %s140, %s141
      %p152 = scmp.eq.s32.totalorder %s22, 0
      %p153 = por %p151, %p152
      %p154 = scmp.ne.s32.totalorder %s140, %s141
      %p155 = scmp.eq.s32.totalorder %s23, 1
      %p156 = por %p154, %p155
      %p158 = scmp.ne.s32.totalorder %s141, %s157
      %p159 = scmp.eq.s32.totalorder %s23, 0
      %p160 = por %p158, %p159
      %p161 = scmp.le.s32.totalorder 1, %s17
      %p162 = scmp.lt.s32.totalorder %s17, 3
      %p163 = pnand %p161, %p162
      %p164 = pneg %p163
      // Predicated region
      $region9: #{tpu_custom_call.1} parent=5 // pred_check
        _
      $region10: #{tpu_custom_call.1} parent=5 // pred_check_branch
        %166 = sbr.rel (%p163) target = $region12
      $region11: #{tpu_custom_call.1} parent=5 // pred_region
        %s167 = ssub.s32 %s17, 1
        // Predicated region
        $region13: #{tpu_custom_call.1} parent=11 // pred_check
          %p168 = pneg %p64
        $region14: #{tpu_custom_call.1} parent=11 // pred_check_branch
          %170 = sbr.rel (%p168) target = $region16
        $region15: #{tpu_custom_call.1} parent=11 // pred_region
          _
        $region16: #{tpu_custom_call.1} parent=11 // pred_fallthru
          _
        // Predicated region
        $region17: #{tpu_custom_call.1} parent=11 // pred_check
          %p171 = pneg %p85
        $region18: #{tpu_custom_call.1} parent=11 // pred_check_branch
          %173 = sbr.rel (%p171) target = $region20
        $region19: #{tpu_custom_call.1} parent=11 // pred_region
          _
        $region20: #{tpu_custom_call.1} parent=11 // pred_fallthru
          _
        // Predicated region
        $region21: #{tpu_custom_call.1} parent=11 // pred_check
          %p174 = pneg %p106
        $region22: #{tpu_custom_call.1} parent=11 // pred_check_branch
          %176 = sbr.rel (%p174) target = $region24
        $region23: #{tpu_custom_call.1} parent=11 // pred_region
          _
        $region24: #{tpu_custom_call.1} parent=11 // pred_fallthru
          _
        // Predicated region
        $region25: #{tpu_custom_call.1} parent=11 // pred_check
          %p177 = pneg %p127
        $region26: #{tpu_custom_call.1} parent=11 // pred_check_branch
          %179 = sbr.rel (%p177) target = $region28
        $region27: #{tpu_custom_call.1} parent=11 // pred_region
          _
        $region28: #{tpu_custom_call.1} parent=11 // pred_fallthru
          _
      $region12: #{tpu_custom_call.1} parent=5 // pred_fallthru
        _
      %p180 = scmp.lt.s32.totalorder %s17, 2
      // Predicated region
      $region29: #{tpu_custom_call.1} parent=5 // pred_check
        %p181 = pneg %p180
      $region30: #{tpu_custom_call.1} parent=5 // pred_check_branch
        %183 = sbr.rel (%p181) target = $region32
      $region31: #{tpu_custom_call.1} parent=5 // pred_region
        // Predicated region
        $region33: #{tpu_custom_call.1} parent=31 // pred_check
          %p184 = pneg %p37
        $region34: #{tpu_custom_call.1} parent=31 // pred_check_branch
          %186 = sbr.rel (%p184) target = $region36
        $region35: #{tpu_custom_call.1} parent=31 // pred_region
          %s187 = sand.u32 %s27, 1
          %s188 = scalar_lea.sflag [#allocation3], %s187
          %s189 = sand.u32 %s27, 1
          %s190 = smul.addr %s189, 32
          %s191 = scalar_lea.vmem [#allocation2], %s190
          %s193 = ssub.s32 512, 512
          %194 = vsyncadd %s188, %s193
          %s195 = smul.addr %s17, 4
          %s196 = smul.addr %s195, 128
          %s197 = scalar_lea.hbm %s0, %s196
          %s198 = sshll.u32 %s191, 4
          %s199 = int_to_ptr.vmem [resolvable:$true] %s198
          %204 = dma.hbm_to_vmem [thread:$0]  %s197, 512, %s199, %s188, 128, 128, 8
        $region36: #{tpu_custom_call.1} parent=31 // pred_fallthru
          _
      $region32: #{tpu_custom_call.1} parent=5 // pred_fallthru
        _
      %p205 = scmp.le.s32.totalorder 1, %s17
      %p206 = scmp.lt.s32.totalorder %s17, 3
      %p207 = pnand %p205, %p206
      %p208 = pneg %p207
      // Predicated region
      $region37: #{tpu_custom_call.1} parent=5 // pred_check
        _
      $region38: #{tpu_custom_call.1} parent=5 // pred_check_branch
        %210 = sbr.rel (%p207) target = $region40
      $region39: #{tpu_custom_call.1} parent=5 // pred_region
        %s211 = ssub.s32 %s17, 1
        %s212 = sand.u32 %s30, 1
        %s213 = scalar_lea.sflag [#allocation3], %s212
        %s214 = sand.u32 %s30, 1
        %s215 = smul.addr %s214, 32
        %s216 = scalar_lea.vmem [#allocation2], %s215
        // Predicated region
        $region41: #{tpu_custom_call.1} parent=39 // pred_check
          %p217 = pneg %p43
        $region42: #{tpu_custom_call.1} parent=39 // pred_check_branch
          %219 = sbr.rel (%p217) target = $region44
        $region43: #{tpu_custom_call.1} parent=39 // pred_region
          %220 = dma.done %s213, 512
        $region44: #{tpu_custom_call.1} parent=39 // pred_fallthru
          _
        %s221 = sand.u32 %s30, 1
        %s222 = scalar_lea.sflag [#allocation3], %s221
        %s223 = sand.u32 %s30, 1
        %s224 = smul.addr %s223, 32
        %s225 = scalar_lea.vmem [#allocation2], %s224
        %p226 = pneg %p43
        %p227 = pneg %p40
        %p228 = pneg %p64
        %p229 = pneg %p61
        %p230 = pneg %p85
        %p231 = pneg %p82
        %p232 = pneg %p106
        %p233 = pneg %p103
        %p234 = pneg %p127
        %p235 = pneg %p124
        %p236 = pneg %p153
        %p237 = pneg %p150
        %s238 = sand.u32 %s140, 1
        %s239 = scalar_lea.sflag [#allocation4], %s238
        %s240 = sand.u32 %s140, 1
        %s241 = smul.addr %s240, 32
        %s242 = scalar_lea.vmem [#allocation5], %s241
        %v243 = vld [vmem:[%s216] sm:$0xff]
        %v244 = vld [vmem:[%s216 + $0x8] sm:$0xff]
        %v245 = vld [vmem:[%s216 + $0x10] sm:$0xff]
        %v246 = vld [vmem:[%s216 + $0x18] sm:$0xff]
        %vm247 = vcmask 523264
        %v248 = vsel %vm247, %v243, 0.0
        %249 = vadd.xlane.f32.xlu0 %v248
        %v250 = vpop.xlane.xlu0 %249
        %v251 = vsel %vm247, %v244, 0.0
        %252 = vadd.xlane.f32.xlu0 %v251
        %v253 = vpop.xlane.xlu0 %252
        %v254 = vsel %vm247, %v245, 0.0
        %255 = vadd.xlane.f32.xlu0 %v254
        %v256 = vpop.xlane.xlu0 %255
        %v257 = vsel %vm247, %v246, 0.0
        %258 = vadd.xlane.f32.xlu0 %v257
        %v259 = vpop.xlane.xlu0 %258
        %v260 = vmul.f32 %v250, 0.015625
        %v261 = vmul.f32 %v253, 0.015625
        %v262 = vmul.f32 %v256, 0.015625
        %v263 = vmul.f32 %v259, 0.015625
        %v264 = vld [vmem:[%s1] sm:$0xff]
        %v265 = vld [vmem:[%s1 + $0x8] sm:$0xff]
        %v266 = vld [vmem:[%s1 + $0x10] sm:$0xff]
        %v267 = vld [vmem:[%s1 + $0x18] sm:$0xff]
        %v268 = vld [vmem:[%s2] sm:$0x1]
        %v273 = vlaneseq
        %v274 = vand.u32 %v273, 127
        %v275 = vlaneseq
        %v276 = vshrl.u32 %v275, 7
        %v277 = vsub.s32 %v274, %v276
        %v278 = vrot.slane %v260, %v277
        %v279 = vadd.s32 %v274, 4294967288
        %v280 = vlaneseq
        %v281 = vshrl.u32 %v280, 7
        %v282 = vsub.s32 %v279, %v281
        %v283 = vrot.slane %v261, %v282
        %vm284 = vcmask 130112
        %v285 = vsel %vm284, %v283, %v278
        %v286 = vadd.s32 %v274, 4294967280
        %v287 = vlaneseq
        %v288 = vshrl.u32 %v287, 7
        %v289 = vsub.s32 %v286, %v288
        %v290 = vrot.slane %v262, %v289
        %vm291 = vcmask 195712
        %v292 = vsel %vm291, %v290, %v285
        %v293 = vadd.s32 %v274, 4294967272
        %v294 = vlaneseq
        %v295 = vshrl.u32 %v294, 7
        %v296 = vsub.s32 %v293, %v295
        %v297 = vrot.slane %v263, %v296
        %vm298 = vcmask 261312
        %v299 = vsel %vm298, %v297, %v292
        %vm300 = vcmask 261120
        %v301 = vsel %vm300, %v299, 0
        %303 = vmatprep.subr.mxu0 0.0
        %304 = vmatpush1.msra.mxu0 %v264
        %305 = vmatprep.subr.mxu0 0.0
        %306 = vmatpush1.msra.mxu0 %v265
        %307 = vmatprep.subr.mxu0 0.0
        %308 = vmatpush1.msra.mxu0 %v266
        %309 = vmatprep.subr.mxu0 0.0
        %310 = vmatpush1.msra.mxu0 %v267
        %311 = vmatprep.subr.mxu0 0.0
        %312 = vmatpush1.msra.mxu0 0.0
        %313 = vmatprep.subr.mxu0 0.0
        %314 = vmatpush1.msra.mxu0 0.0
        %315 = vmatprep.subr.mxu0 0.0
        %316 = vmatpush1.msra.mxu0 0.0
        %317 = vmatprep.subr.mxu0 0.0
        %318 = vmatpush1.msra.mxu0 0.0
        %319 = vmatprep.subr.mxu0 0.0
        %320 = vmatpush1.msra.mxu0 0.0
        %321 = vmatprep.subr.mxu0 0.0
        %322 = vmatpush1.msra.mxu0 0.0
        %323 = vmatprep.subr.mxu0 0.0
        %324 = vmatpush1.msra.mxu0 0.0
        %325 = vmatprep.subr.mxu0 0.0
        %326 = vmatpush1.msra.mxu0 0.0
        %327 = vmatprep.subr.mxu0 0.0
        %328 = vmatpush1.msra.mxu0 0.0
        %329 = vmatprep.subr.mxu0 0.0
        %330 = vmatpush1.msra.mxu0 0.0
        %331 = vmatprep.subr.mxu0 0.0
        %332 = vmatpush1.msra.mxu0 0.0
        %333 = vmatprep.subr.mxu0 0.0
        %334 = vmatpush1.msra.mxu0 0.0
        %335 = vmatprep.subr.mxu0 0.0
        %336 = vmatpush1.msra.mxu0 0.0
        %337 = vmatprep.subr.mxu0 0.0
        %338 = vmatpush1.msra.mxu0 0.0
        %339 = vmatprep.subr.mxu0 0.0
        %340 = vmatpush1.msra.mxu0 0.0
        %341 = vmatprep.subr.mxu0 0.0
        %342 = vmatpush1.msra.mxu0 0.0
        %343 = vmatprep.subr.mxu0 0.0
        %344 = vmatpush1.msra.mxu0 0.0
        %345 = vmatprep.subr.mxu0 0.0
        %346 = vmatpush1.msra.mxu0 0.0
        %347 = vmatprep.subr.mxu0 0.0
        %348 = vmatpush1.msra.mxu0 0.0
        %349 = vmatprep.subr.mxu0 0.0
        %350 = vmatpush1.msra.mxu0 0.0
        %351 = vmatprep.subr.mxu0 0.0
        %352 = vmatpush1.msra.mxu0 0.0
        %353 = vmatprep.subr.mxu0 0.0
        %354 = vmatpush1.msra.mxu0 0.0
        %355 = vmatprep.subr.mxu0 0.0
        %356 = vmatpush1.msra.mxu0 0.0
        %357 = vmatprep.subr.mxu0 0.0
        %358 = vmatpush1.msra.mxu0 0.0
        %359 = vmatprep.subr.mxu0 0.0
        %360 = vmatpush1.msra.mxu0 0.0
        %361 = vmatprep.subr.mxu0 0.0
        %362 = vmatpush1.msra.mxu0 0.0
        %363 = vmatprep.subr.mxu0 0.0
        %364 = vmatpush1.msra.mxu0 0.0
        %365 = vmatprep.subr.mxu0 0.0
        %366 = vmatpush1.msra.mxu0 0.0
        %367 = vmatprep.mubr.f32.mxu0 0.0
        %368 = vmatmul.mubr.f32.gmra.mrb[0].mxu0 %v301
        %v369 = vpop.f32.mrb[0].mxu0
        %v370 = vadd.f32 %v268, %v369
        %v371 = vpop.f32.mrb[0].mxu0
        %372 = vdwg.mxu0
        %vm373 = vcmp.gt.f32.partialorder %v370, 0.0
        %v374 = vmul.f32 %v370, 0.01
        %v375 = vsel %vm373, %v370, %v374
        %v376 = vld [vmem:[%s3] sm:$0xff]
        %v377 = vld [vmem:[%s4] sm:$0x1]
        %vm378 = vcmask 64512
        %v380 = vsel %vm378, %v375, 0
        %382 = vmatprep.subr.mxu0 0.0
        %383 = vmatpush1.msra.mxu0 %v376
        %384 = vmatprep.subr.mxu0 0.0
        %385 = vmatpush1.msra.mxu0 0.0
        %386 = vmatprep.subr.mxu0 0.0
        %387 = vmatpush1.msra.mxu0 0.0
        %388 = vmatprep.subr.mxu0 0.0
        %389 = vmatpush1.msra.mxu0 0.0
        %390 = vmatprep.subr.mxu0 0.0
        %391 = vmatpush1.msra.mxu0 0.0
        %392 = vmatprep.subr.mxu0 0.0
        %393 = vmatpush1.msra.mxu0 0.0
        %394 = vmatprep.subr.mxu0 0.0
        %395 = vmatpush1.msra.mxu0 0.0
        %396 = vmatprep.subr.mxu0 0.0
        %397 = vmatpush1.msra.mxu0 0.0
        %398 = vmatprep.subr.mxu0 0.0
        %399 = vmatpush1.msra.mxu0 0.0
        %400 = vmatprep.subr.mxu0 0.0
        %401 = vmatpush1.msra.mxu0 0.0
        %402 = vmatprep.subr.mxu0 0.0
        %403 = vmatpush1.msra.mxu0 0.0
        %404 = vmatprep.subr.mxu0 0.0
        %405 = vmatpush1.msra.mxu0 0.0
        %406 = vmatprep.subr.mxu0 0.0
        %407 = vmatpush1.msra.mxu0 0.0
        %408 = vmatprep.subr.mxu0 0.0
        %409 = vmatpush1.msra.mxu0 0.0
        %410 = vmatprep.subr.mxu0 0.0
        %411 = vmatpush1.msra.mxu0 0.0
        %412 = vmatprep.subr.mxu0 0.0
        %413 = vmatpush1.msra.mxu0 0.0
        %414 = vmatprep.subr.mxu0 0.0
        %415 = vmatpush1.msra.mxu0 0.0
        %416 = vmatprep.subr.mxu0 0.0
        %417 = vmatpush1.msra.mxu0 0.0
        %418 = vmatprep.subr.mxu0 0.0
        %419 = vmatpush1.msra.mxu0 0.0
        %420 = vmatprep.subr.mxu0 0.0
        %421 = vmatpush1.msra.mxu0 0.0
        %422 = vmatprep.subr.mxu0 0.0
        %423 = vmatpush1.msra.mxu0 0.0
        %424 = vmatprep.subr.mxu0 0.0
        %425 = vmatpush1.msra.mxu0 0.0
        %426 = vmatprep.subr.mxu0 0.0
        %427 = vmatpush1.msra.mxu0 0.0
        %428 = vmatprep.subr.mxu0 0.0
        %429 = vmatpush1.msra.mxu0 0.0
        %430 = vmatprep.subr.mxu0 0.0
        %431 = vmatpush1.msra.mxu0 0.0
        %432 = vmatprep.subr.mxu0 0.0
        %433 = vmatpush1.msra.mxu0 0.0
        %434 = vmatprep.subr.mxu0 0.0
        %435 = vmatpush1.msra.mxu0 0.0
        %436 = vmatprep.subr.mxu0 0.0
        %437 = vmatpush1.msra.mxu0 0.0
        %438 = vmatprep.subr.mxu0 0.0
        %439 = vmatpush1.msra.mxu0 0.0
        %440 = vmatprep.subr.mxu0 0.0
        %441 = vmatpush1.msra.mxu0 0.0
        %442 = vmatprep.subr.mxu0 0.0
        %443 = vmatpush1.msra.mxu0 0.0
        %444 = vmatprep.subr.mxu0 0.0
        %445 = vmatpush1.msra.mxu0 0.0
        %446 = vmatprep.mubr.f32.mxu0 0.0
        %447 = vmatmul.mubr.f32.gmra.mrb[0].mxu0 %v380
        %v448 = vpop.f32.mrb[0].mxu0
        %v449 = vadd.f32 %v377, %v448
        %v450 = vpop.f32.mrb[0].mxu0
        %451 = vdwg.mxu0
        %v452 = vxor.u32 %v449, 2147483648
        %v453 = vmul.f32 %v452, 1.442695
        %v454 = vpow.pop %v453
        %v455 = vadd.f32 %v454, 1.0
        %v456 = vrcp.pop %v455
        %v457 = vmul.f32 1.0, %v456
        %v458 = vlaneseq
        %v459 = vshrl.u32 %v458, 7
        %v460 = vadd.s32 %v459, 8
        %v461 = vadd.s32 %v459, 16
        %v462 = vadd.s32 %v459, 24
        %vm463 = vcmp.eq.s32.totalorder %v459, %v274
        %vm464 = vcmp.eq.s32.totalorder %v460, %v274
        %vm465 = vcmp.eq.s32.totalorder %v461, %v274
        %vm466 = vcmp.eq.s32.totalorder %v462, %v274
        %v467 = vsel %vm463, 1, 0
        %v468 = vsel %vm464, 1, 0
        %v469 = vsel %vm465, 1, 0
        %v470 = vsel %vm466, 1, 0
        %v471 = vcvt.s32.f32 %v467
        %v472 = vcvt.s32.f32 %v468
        %v473 = vcvt.s32.f32 %v469
        %v474 = vcvt.s32.f32 %v470
        %v475 = vlaneseq
        %v476 = vshrl.u32 %v475, 7
        %v477 = vsub.s32 0, %v476
        %v478 = vrot.slane %v457, %v477
        %v479 = vmul.f32 %v471, %v478
        %v480 = vmul.f32 %v472, %v478
        %v481 = vmul.f32 %v473, %v478
        %v482 = vmul.f32 %v474, %v478
        %v483 = vsel %vm300, %v479, 0.0
        %484 = vadd.xlane.f32.xlu0 %v483
        %v485 = vpop.xlane.xlu0 %484
        %v486 = vsel %vm300, %v480, 0.0
        %487 = vadd.xlane.f32.xlu0 %v486
        %v488 = vpop.xlane.xlu0 %487
        %v489 = vsel %vm300, %v481, 0.0
        %490 = vadd.xlane.f32.xlu0 %v489
        %v491 = vpop.xlane.xlu0 %490
        %v492 = vsel %vm300, %v482, 0.0
        %493 = vadd.xlane.f32.xlu0 %v492
        %v494 = vpop.xlane.xlu0 %493
        %vm495 = vcmp.gt.f32.partialorder %v485, %v478
        %vm496 = vcmp.gt.f32.partialorder %v488, %v478
        %vm497 = vcmp.gt.f32.partialorder %v491, %v478
        %vm498 = vcmp.gt.f32.partialorder %v494, %v478
        %v499 = vsel %vm495, 1, 0
        %v500 = vsel %vm496, 1, 0
        %v501 = vsel %vm497, 1, 0
        %v502 = vsel %vm498, 1, 0
        %vm503 = vcmp.eq.f32.partialorder %v485, %v478
        %vm504 = vcmp.eq.f32.partialorder %v488, %v478
        %vm505 = vcmp.eq.f32.partialorder %v491, %v478
        %vm506 = vcmp.eq.f32.partialorder %v494, %v478
        %v507 = vsel %vm503, 1, 0
        %v508 = vsel %vm504, 1, 0
        %v509 = vsel %vm505, 1, 0
        %v510 = vsel %vm506, 1, 0
        %vm511 = vcmp.lt.s32.totalorder %v459, %v274
        %vm512 = vcmp.lt.s32.totalorder %v460, %v274
        %vm513 = vcmp.lt.s32.totalorder %v461, %v274
        %vm514 = vcmp.lt.s32.totalorder %v462, %v274
        %v515 = vsel %vm511, 1, 0
        %v516 = vsel %vm512, 1, 0
        %v517 = vsel %vm513, 1, 0
        %v518 = vsel %vm514, 1, 0
        %v519 = vmul.u32 %v507, %v515
        %v520 = vmul.u32 %v508, %v516
        %v521 = vmul.u32 %v509, %v517
        %v522 = vmul.u32 %v510, %v518
        %v523 = vadd.s32 %v499, %v519
        %v524 = vadd.s32 %v500, %v520
        %v525 = vadd.s32 %v501, %v521
        %v526 = vadd.s32 %v502, %v522
        %v527 = vsel %vm300, %v523, 0
        %v528 = vsel %vm300, %v524, 0
        %v529 = vsel %vm300, %v525, 0
        %v530 = vsel %vm300, %v526, 0
        %v531 = vadd.s32 %v527, %v528
        %v532 = vadd.s32 %v529, %v530
        %v533 = vadd.s32 %v531, %v532
        %v534 = vrot.slane %v533, 4
        %v535 = vadd.s32 %v533, %v534
        %v536 = vrot.slane %v535, 2
        %v537 = vadd.s32 %v535, %v536
        %v538 = vrot.slane %v537, 1
        %v539 = vadd.s32 %v537, %v538
        %vm540 = vcmp.eq.s32.totalorder %v539, %v459
        %vm541 = vcmp.eq.s32.totalorder %v539, %v460
        %vm542 = vcmp.eq.s32.totalorder %v539, %v461
        %vm543 = vcmp.eq.s32.totalorder %v539, %v462
        %v544 = vsel %vm540, 1, 0
        %v545 = vsel %vm541, 1, 0
        %v546 = vsel %vm542, 1, 0
        %v547 = vsel %vm543, 1, 0
        %v548 = vcvt.s32.f32 %v544
        %v549 = vcvt.s32.f32 %v545
        %v550 = vcvt.s32.f32 %v546
        %v551 = vcvt.s32.f32 %v547
        %v553 = vsel %vm300, %v548, 0
        %v556 = vsel %vm300, %v549, 0
        %v559 = vsel %vm300, %v550, 0
        %v562 = vsel %vm300, %v551, 0
        %564 = vmatprep.subr.mxu0 0.0
        %565 = vmatpush1.msra.mxu0 %v243
        %566 = vmatprep.subr.mxu0 0.0
        %567 = vmatpush1.msra.mxu0 %v244
        %568 = vmatprep.subr.mxu0 0.0
        %569 = vmatpush1.msra.mxu0 %v245
        %570 = vmatprep.subr.mxu0 0.0
        %571 = vmatpush1.msra.mxu0 %v246
        %572 = vmatprep.subr.mxu0 0.0
        %573 = vmatpush1.msra.mxu0 0.0
        %574 = vmatprep.subr.mxu0 0.0
        %575 = vmatpush1.msra.mxu0 0.0
        %576 = vmatprep.subr.mxu0 0.0
        %577 = vmatpush1.msra.mxu0 0.0
        %578 = vmatprep.subr.mxu0 0.0
        %579 = vmatpush1.msra.mxu0 0.0
        %580 = vmatprep.subr.mxu0 0.0
        %581 = vmatpush1.msra.mxu0 0.0
        %582 = vmatprep.subr.mxu0 0.0
        %583 = vmatpush1.msra.mxu0 0.0
        %584 = vmatprep.subr.mxu0 0.0
        %585 = vmatpush1.msra.mxu0 0.0
        %586 = vmatprep.subr.mxu0 0.0
        %587 = vmatpush1.msra.mxu0 0.0
        %588 = vmatprep.subr.mxu0 0.0
        %589 = vmatpush1.msra.mxu0 0.0
        %590 = vmatprep.subr.mxu0 0.0
        %591 = vmatpush1.msra.mxu0 0.0
        %592 = vmatprep.subr.mxu0 0.0
        %593 = vmatpush1.msra.mxu0 0.0
        %594 = vmatprep.subr.mxu0 0.0
        %595 = vmatpush1.msra.mxu0 0.0
        %596 = vmatprep.subr.mxu0 0.0
        %597 = vmatpush1.msra.mxu0 0.0
        %598 = vmatprep.subr.mxu0 0.0
        %599 = vmatpush1.msra.mxu0 0.0
        %600 = vmatprep.subr.mxu0 0.0
        %601 = vmatpush1.msra.mxu0 0.0
        %602 = vmatprep.subr.mxu0 0.0
        %603 = vmatpush1.msra.mxu0 0.0
        %604 = vmatprep.subr.mxu0 0.0
        %605 = vmatpush1.msra.mxu0 0.0
        %606 = vmatprep.subr.mxu0 0.0
        %607 = vmatpush1.msra.mxu0 0.0
        %608 = vmatprep.subr.mxu0 0.0
        %609 = vmatpush1.msra.mxu0 0.0
        %610 = vmatprep.subr.mxu0 0.0
        %611 = vmatpush1.msra.mxu0 0.0
        %612 = vmatprep.subr.mxu0 0.0
        %613 = vmatpush1.msra.mxu0 0.0
        %614 = vmatprep.subr.mxu0 0.0
        %615 = vmatpush1.msra.mxu0 0.0
        %616 = vmatprep.subr.mxu0 0.0
        %617 = vmatpush1.msra.mxu0 0.0
        %618 = vmatprep.subr.mxu0 0.0
        %619 = vmatpush1.msra.mxu0 0.0
        %620 = vmatprep.subr.mxu0 0.0
        %621 = vmatpush1.msra.mxu0 0.0
        %622 = vmatprep.subr.mxu0 0.0
        %623 = vmatpush1.msra.mxu0 0.0
        %624 = vmatprep.subr.mxu0 0.0
        %625 = vmatpush1.msra.mxu0 0.0
        %626 = vmatprep.subr.mxu0 0.0
        %627 = vmatpush1.msra.mxu0 0.0
        %628 = vmatprep.mubr.f32.mxu0 0.0
        %629 = vmatmul.mubr.f32.gmra.mrb[0].mxu0 %v553
        %v630 = vpop.f32.mrb[0].mxu0
        %v631 = vadd.f32 0.0, %v630
        %v632 = vpop.f32.mrb[0].mxu0
        %633 = vmatprep.mubr.f32.mxu0 0.0
        %634 = vmatmul.mubr.f32.gmra.mrb[0].mxu0 %v556
        %v635 = vpop.f32.mrb[0].mxu0
        %v636 = vadd.f32 0.0, %v635
        %v637 = vpop.f32.mrb[0].mxu0
        %638 = vmatprep.mubr.f32.mxu0 0.0
        %639 = vmatmul.mubr.f32.gmra.mrb[0].mxu0 %v559
        %v640 = vpop.f32.mrb[0].mxu0
        %v641 = vadd.f32 0.0, %v640
        %v642 = vpop.f32.mrb[0].mxu0
        %643 = vmatprep.mubr.f32.mxu0 0.0
        %644 = vmatmul.mubr.f32.gmra.mrb[0].mxu0 %v562
        %v645 = vpop.f32.mrb[0].mxu0
        %v646 = vadd.f32 0.0, %v645
        %v647 = vpop.f32.mrb[0].mxu0
        %648 = vdwg.mxu0
        %v649 = vadd.f32 %v243, %v631
        %v650 = vadd.f32 %v244, %v636
        %v651 = vadd.f32 %v245, %v641
        %v652 = vadd.f32 %v246, %v646
        %653 = vst.msk [vmem:[%s242] sm:$0xff] %vm247, %v649
        %654 = vst.msk [vmem:[%s242 + $0x8] sm:$0xff] %vm247, %v650
        %655 = vst.msk [vmem:[%s242 + $0x10] sm:$0xff] %vm247, %v651
        %656 = vst.msk [vmem:[%s242 + $0x18] sm:$0xff] %vm247, %v652
        %s657 = sand.u32 %s140, 1
        %s658 = scalar_lea.sflag [#allocation4], %s657
        %s659 = sand.u32 %s140, 1
        %s660 = smul.addr %s659, 32
        %s661 = scalar_lea.vmem [#allocation5], %s660
        // Predicated region
        $region45: #{tpu_custom_call.1} parent=39 // pred_check
          %p662 = pneg %p150
        $region46: #{tpu_custom_call.1} parent=39 // pred_check_branch
          %664 = sbr.rel (%p662) target = $region48
        $region47: #{tpu_custom_call.1} parent=39 // pred_region
          %s666 = ssub.s32 512, 512
          %667 = vsyncadd %s658, %s666
          %s668 = smul.addr %s22, 4
          %s669 = smul.addr %s668, 128
          %s670 = scalar_lea.hbm %s5, %s669
          %s671 = sshll.u32 %s661, 4
          %s672 = int_to_ptr.vmem [resolvable:$true] %s671
          %677 = dma.vmem_to_hbm [thread:$0]  %s672, 512, %s670, %s658, 128, 128, 8
        $region48: #{tpu_custom_call.1} parent=39 // pred_fallthru
          _
      $region40: #{tpu_custom_call.1} parent=5 // pred_fallthru
        _
      %p678 = scmp.le.s32.totalorder 2, %s17
      // Predicated region
      $region49: #{tpu_custom_call.1} parent=5 // pred_check
        %p679 = pneg %p678
      $region50: #{tpu_custom_call.1} parent=5 // pred_check_branch
        %681 = sbr.rel (%p679) target = $region52
      $region51: #{tpu_custom_call.1} parent=5 // pred_region
        %s682 = ssub.s32 %s17, 2
        // Predicated region
        $region53: #{tpu_custom_call.1} parent=51 // pred_check
          %p683 = pneg %p156
        $region54: #{tpu_custom_call.1} parent=51 // pred_check_branch
          %685 = sbr.rel (%p683) target = $region56
        $region55: #{tpu_custom_call.1} parent=51 // pred_region
          %s686 = sand.u32 %s141, 1
          %s687 = scalar_lea.sflag [#allocation4], %s686
          %s688 = sand.u32 %s141, 1
          %s689 = smul.addr %s688, 32
          %s690 = scalar_lea.vmem [#allocation5], %s689
          %691 = dma.done %s687, 512
        $region56: #{tpu_custom_call.1} parent=51 // pred_fallthru
          _
      $region52: #{tpu_custom_call.1} parent=5 // pred_fallthru
        _
    $region6: #{tpu_custom_call.1} parent=1 // loop_footer
      %s21 = sadd.s32 1, %s17
    $region7: #{tpu_custom_call.1} parent=1 // loop_footer_branch
      %16 = sbr.rel target = $region3
    $region8: #{tpu_custom_call.1} parent=1 // loop_exit
      _
    %692 = vsyncpa [#allocation3], 1
    %s693 = scalar_lea.sflag [#allocation3], 1
    %694 = vsyncpa %s693, 1
    %695 = vsyncpa [#allocation4], 1
    %s696 = scalar_lea.sflag [#allocation4], 1
    %697 = vsyncpa %s696, 1

</llo_original>
